<compile_context>
chip_gen: v7x
topology: tpu7x:2x2x1
jax: 0.10.0
libtpu: 0.0.40
codegen_flags: <defaults>
</compile_context>

<pallas_src>
import math
import functools

import jax
import jax.numpy as jnp
from jax.experimental import pallas as pl
from jax.experimental.pallas import tpu as pltpu  # noqa: F401  (kept for TPU-specific params if needed)


# ----------------------------- Pallas kernel -------------------------------
def fused_mlp_kernel(*refs, n_hidden: int):
    """refs = (x_ref, [w_ref, b_ref] * n_hidden, wfc_ref, bfc_ref, o_ref).

    All weights/biases are whole-array VMEM blocks; the layer loop is a static
    Python loop (unrolled at trace time), so the full MLP runs in one launch.
    """
    x_ref = refs[0]
    o_ref = refs[-1]

    h = x_ref[...]
    idx = 1
    for _ in range(n_hidden):
        w_ref, b_ref = refs[idx], refs[idx + 1]
        idx += 2
        y = jnp.dot(h, w_ref[...], preferred_element_type=jnp.float32)
        y = y + b_ref[...]
        # F.leaky_relu default negative_slope = 0.01
        h = jnp.maximum(y, 0.01 * y)

    w_ref, b_ref = refs[idx], refs[idx + 1]
    y = jnp.dot(h, w_ref[...], preferred_element_type=jnp.float32)
    y = y + b_ref[...]
    o_ref[...] = y.astype(o_ref.dtype)


def _full_spec(shape):
    return pl.BlockSpec(shape, lambda: (0,) * len(shape))


def net1_forward(x, padded_params, *, in_dim: int, num_classes: int):
    """Fused Net1 forward (eval semantics) in a single pallas_call.

    padded_params: list of (W.T padded to (K_pad, N_pad) f32, bias padded to
    (1, N_pad) f32); last entry is the fc layer.
    """
    B = x.shape[0]
    K0_pad = padded_params[0][0].shape[0]
    N_out_pad = padded_params[-1][0].shape[1]

    # Zero-pad the input features to the padded fan-in (199 -> 256).
    x_pad = jnp.pad(x, ((0, 0), (0, K0_pad - in_dim)))

    flat_inputs = [x_pad]
    in_specs = [_full_spec(x_pad.shape)]
    for w_t, b in padded_params:
        flat_inputs += [w_t, b]
        in_specs += [_full_spec(w_t.shape), _full_spec(b.shape)]

    kernel = functools.partial(fused_mlp_kernel, n_hidden=len(padded_params) - 1)
    out_pad = pl.pallas_call(
        kernel,
        out_shape=jax.ShapeDtypeStruct((B, N_out_pad), jnp.float32),
        in_specs=in_specs,
        out_specs=_full_spec((B, N_out_pad)),
    )(*flat_inputs)

    # TODO(synk): training-mode inplace Dropout(0.5) not modeled (eval => identity;
    # its return value is also discarded in the original forward).
    return out_pad[:, :num_classes]


# --------------------------- parameter creation -----------------------------
def orthogonal(key, shape, gain):
    """Deterministic orthogonal init (like torch.nn.init.orthogonal)."""
    rows, cols = shape
    n = max(rows, cols)
    a = jax.random.normal(key, (n, n), dtype=jnp.float32)
    q, r = jnp.linalg.qr(a)
    q = q * jnp.sign(jnp.diag(r))[None, :]
    return (gain * q[:rows, :cols]).astype(jnp.float32)


def build_net1_params(key, num_classes, depth, width):
    """Shapes follow Net1.__init__: fan_in=199, fan_out=int(fan_in*width), ...

    Returns torch-layout params [(W (out,in), b (out,)), ...]; fc layer last.
    """
    gain = math.sqrt(2.0 / (1.0 + 0.01 ** 2))  # calculate_gain('leaky_relu')
    params = []
    fan_in = 199
    fan_out = int(199 * width)
    for _ in range(depth - 1):
        key, kw, kb = jax.random.split(key, 3)
        w = orthogonal(kw, (fan_out, fan_in), gain)          # (out, in), torch layout
        bound = 1.0 / math.sqrt(fan_in)
        b = jax.random.uniform(kb, (fan_out,), jnp.float32, -bound, bound)
        params.append((w, b))
        fan_in = fan_out
        fan_out = int(fan_in * width)
    key, kw, kb = jax.random.split(key, 3)
    w_fc = orthogonal(kw, (num_classes, fan_in), gain)
    bound = 1.0 / math.sqrt(fan_in)
    b_fc = jax.random.uniform(kb, (num_classes,), jnp.float32, -bound, bound)
    params.append((w_fc, b_fc))
    return params


def _pad_up(n, m=128):
    return ((n + m - 1) // m) * m


def pad_and_transpose_params(params):
    """Pre-transpose to (in, out) and zero-pad both dims to multiples of 128.

    Zero padding is exact: padded input columns are zero and padded weight
    rows/cols are zero, so padded activation lanes stay zero through
    leaky_relu (bias padding is zero too).
    """
    padded = []
    for w, b in params:
        out_dim, in_dim = w.shape
        k_pad, n_pad = _pad_up(in_dim), _pad_up(out_dim)
        w_t = jnp.zeros((k_pad, n_pad), jnp.float32).at[:in_dim, :out_dim].set(w.T)
        b_row = jnp.zeros((1, n_pad), jnp.float32).at[0, :out_dim].set(b)
        padded.append((w_t, b_row))
    return padded


# --------------------------------- main -------------------------------------
if __name__ == "__main__":
    num_classes = 10
    depth = 3       # => 2 hidden Linear layers + final fc
    width = 1.0     # fan stays at 199
    batch = 8
    in_dim = 199

    key = jax.random.PRNGKey(0)
    k_params, k_x = jax.random.split(key)

    params = build_net1_params(k_params, num_classes, depth, width)
    padded_params = pad_and_transpose_params(params)
    x = jax.random.normal(k_x, (batch, in_dim), dtype=jnp.float32)

    fwd = jax.jit(functools.partial(net1_forward, in_dim=in_dim,
                                    num_classes=num_classes))
    out = fwd(x, padded_params)
    out = jax.block_until_ready(out)
    assert out.shape == (batch, num_classes), out.shape

    # sanity check against pure-JAX reference (unpadded, torch-layout weights)
    ref = x
    for w, b in params[:-1]:
        ref = ref @ w.T + b
        ref = jnp.where(ref > 0, ref, 0.01 * ref)
    w_fc, b_fc = params[-1]
    ref = ref @ w_fc.T + b_fc
    assert jnp.allclose(out, ref, atol=1e-4, rtol=1e-4)

    print("KERNEL_OK")
</pallas_src>

<mosaic_0001>
module attributes {stable_mosaic.version = 11 : i64} {
  func.func @fused_mlp_kernel(%arg0: memref<8x256xf32, #tpu.memory_space<vmem>>, %arg1: memref<256x256xf32, #tpu.memory_space<vmem>>, %arg2: memref<1x256xf32, #tpu.memory_space<vmem>>, %arg3: memref<256x256xf32, #tpu.memory_space<vmem>>, %arg4: memref<1x256xf32, #tpu.memory_space<vmem>>, %arg5: memref<256x128xf32, #tpu.memory_space<vmem>>, %arg6: memref<1x128xf32, #tpu.memory_space<vmem>>, %arg7: memref<8x128xf32, #tpu.memory_space<vmem>>) attributes {dimension_semantics = [], scalar_prefetch = 0 : i64, scratch_operands = 0 : i64, tpu.core_type = #tpu.core_type<tc>} {
    %c0 = arith.constant 0 : index
    %c0_0 = arith.constant 0 : index
    %0 = vector.load %arg0[%c0, %c0_0] : memref<8x256xf32, #tpu.memory_space<vmem>>, vector<8x256xf32>
    %c0_1 = arith.constant 0 : index
    %c0_2 = arith.constant 0 : index
    %1 = vector.load %arg1[%c0_1, %c0_2] : memref<256x256xf32, #tpu.memory_space<vmem>>, vector<256x256xf32>
    %cst = arith.constant dense<0.000000e+00> : vector<8x256xf32>
    %2 = tpu.matmul %0, %1, %cst {dimension_numbers = #tpu.dot_dimension_numbers<[1], [0], [0], [1], [0, 0, 1, 1], [], []>} : vector<8x256xf32>, vector<256x256xf32>, vector<8x256xf32> -> vector<8x256xf32>
    %c0_3 = arith.constant 0 : index
    %c0_4 = arith.constant 0 : index
    %3 = vector.load %arg2[%c0_3, %c0_4] : memref<1x256xf32, #tpu.memory_space<vmem>>, vector<1x256xf32>
    %4 = vector.broadcast %3 : vector<1x256xf32> to vector<8x256xf32>
    %5 = arith.addf %2, %4 : vector<8x256xf32>
    %cst_5 = arith.constant 0.00999999977 : f32
    %6 = vector.broadcast %cst_5 : f32 to vector<8x256xf32>
    %7 = arith.mulf %6, %5 : vector<8x256xf32>
    %8 = arith.maximumf %5, %7 : vector<8x256xf32>
    %c0_6 = arith.constant 0 : index
    %c0_7 = arith.constant 0 : index
    %9 = vector.load %arg3[%c0_6, %c0_7] : memref<256x256xf32, #tpu.memory_space<vmem>>, vector<256x256xf32>
    %cst_8 = arith.constant dense<0.000000e+00> : vector<8x256xf32>
    %10 = tpu.matmul %8, %9, %cst_8 {dimension_numbers = #tpu.dot_dimension_numbers<[1], [0], [0], [1], [0, 0, 1, 1], [], []>} : vector<8x256xf32>, vector<256x256xf32>, vector<8x256xf32> -> vector<8x256xf32>
    %c0_9 = arith.constant 0 : index
    %c0_10 = arith.constant 0 : index
    %11 = vector.load %arg4[%c0_9, %c0_10] : memref<1x256xf32, #tpu.memory_space<vmem>>, vector<1x256xf32>
    %12 = vector.broadcast %11 : vector<1x256xf32> to vector<8x256xf32>
    %13 = arith.addf %10, %12 : vector<8x256xf32>
    %cst_11 = arith.constant 0.00999999977 : f32
    %14 = vector.broadcast %cst_11 : f32 to vector<8x256xf32>
    %15 = arith.mulf %14, %13 : vector<8x256xf32>
    %16 = arith.maximumf %13, %15 : vector<8x256xf32>
    %c0_12 = arith.constant 0 : index
    %c0_13 = arith.constant 0 : index
    %17 = vector.load %arg5[%c0_12, %c0_13] : memref<256x128xf32, #tpu.memory_space<vmem>>, vector<256x128xf32>
    %cst_14 = arith.constant dense<0.000000e+00> : vector<8x128xf32>
    %18 = tpu.matmul %16, %17, %cst_14 {dimension_numbers = #tpu.dot_dimension_numbers<[1], [0], [0], [1], [0, 0, 1, 1], [], []>} : vector<8x256xf32>, vector<256x128xf32>, vector<8x128xf32> -> vector<8x128xf32>
    %c0_15 = arith.constant 0 : index
    %c0_16 = arith.constant 0 : index
    %19 = vector.load %arg6[%c0_15, %c0_16] : memref<1x128xf32, #tpu.memory_space<vmem>>, vector<1x128xf32>
    %20 = vector.broadcast %19 : vector<1x128xf32> to vector<8x128xf32>
    %21 = arith.addf %18, %20 : vector<8x128xf32>
    %c0_17 = arith.constant 0 : index
    %c0_18 = arith.constant 0 : index
    %22 = vector.load %arg7[%c0_17, %c0_18] : memref<8x128xf32, #tpu.memory_space<vmem>>, vector<8x128xf32>
    tpu.vector_store %arg7[%c0_17, %c0_18], %21 {strides = array<i32>} : memref<8x128xf32, #tpu.memory_space<vmem>>, vector<8x128xf32>,
    return
  }
}

</mosaic_0001>

<llo_original>
// kernel: net1_forward.1
$region0: #{net1_forward.1}
  #allocation0 [shape = 'u32[]', space=smem, size = 0x4, offset = 0x4, fixed_abs, tag = 'smem constant byte address 0x4 - core index']
  #allocation1 [shape = 'u32[144,128]{1,0:T(1,128)}', space=vmem, size = 0x12000, scoped, tag = 'internal scratch']
  %s0 = inlined_call_operand.vmem [shape: f32[8,256], index: 0, kind: input, shape index: {}]
  %s1 = inlined_call_operand.hbm [shape: f32[256,256], index: 1, kind: input, shape index: {}]
  %s2 = inlined_call_operand.vmem [shape: f32[1,256], index: 2, kind: input, shape index: {}]
  %s3 = inlined_call_operand.hbm [shape: f32[256,256], index: 3, kind: input, shape index: {}]
  %s4 = inlined_call_operand.vmem [shape: f32[1,256], index: 4, kind: input, shape index: {}]
  %s5 = inlined_call_operand.hbm [shape: f32[256,128], index: 5, kind: input, shape index: {}]
  %s6 = inlined_call_operand.vmem [shape: f32[1,128], index: 6, kind: input, shape index: {}]
  %s7 = inlined_call_operand.hbm [shape: f32[8,128], index: 7, kind: output, shape index: {}]
  %s8 = sld [smem:[#allocation0]]
  $region50: #{net1_forward.1} parent=0
    _
  %s10 = ssub.s32 1, %s8
  %s11 = scalar_select 0, %s10, %s8
  $region1: #{net1_forward.1} parent=0
    #allocation2 [shape = 'u8[262144]{0}', space=vmem, size = 0x40000, scoped, tag = 'input window, operand 1, single buffered']
    #allocation3 [shape = 's32[1]{0}', space=sflag, size = 0x4, scoped, tag = 'scoped memory for net1_forward.1']
    #allocation4 [shape = 's32[1]{0}', space=sflag, size = 0x4, scoped, tag = 'scoped memory for net1_forward.1']
    #allocation5 [shape = 'u8[262144]{0}', space=vmem, size = 0x40000, scoped, tag = 'input window, operand 3, single buffered']
    #allocation6 [shape = 's32[1]{0}', space=sflag, size = 0x4, scoped, tag = 'scoped memory for net1_forward.1']
    #allocation7 [shape = 'u8[131072]{0}', space=vmem, size = 0x20000, scoped, tag = 'input window, operand 5, single buffered']
    #allocation8 [shape = 'u8[4096]{0}', space=vmem, size = 0x1000, scoped, tag = 'output window, operand 0, single buffered']
    %12 = vsyncpa [#allocation3], 0
    %13 = vsyncpa [#allocation6], 0
    %14 = vsyncpa [#allocation4], 0
    // Predicated region
    $region2: #{net1_forward.1} parent=1 // pred_check
      _
    $region3: #{net1_forward.1} parent=1 // pred_check_branch
      %16 = sbr.rel (0) target = $region5
    $region4: #{net1_forward.1} parent=1 // pred_region
      _
    $region5: #{net1_forward.1} parent=1 // pred_fallthru
      _
    // Predicated region
    $region6: #{net1_forward.1} parent=1 // pred_check
      _
    $region7: #{net1_forward.1} parent=1 // pred_check_branch
      %18 = sbr.rel (0) target = $region9
    $region8: #{net1_forward.1} parent=1 // pred_region
      %s20 = ssub.s32 8192, 8192
      %21 = vsyncadd [#allocation3], %s20
      %s22 = sshll.u32 [#allocation2], 4
      %s23 = int_to_ptr.vmem [resolvable:$true] %s22
      %28 = dma.hbm_to_vmem [thread:$0]  %s1, 8192, %s23, [#allocation3], 256, 256, 16
    $region9: #{net1_forward.1} parent=1 // pred_fallthru
      _
    // Predicated region
    $region10: #{net1_forward.1} parent=1 // pred_check
      _
    $region11: #{net1_forward.1} parent=1 // pred_check_branch
      %30 = sbr.rel (0) target = $region13
    $region12: #{net1_forward.1} parent=1 // pred_region
      _
    $region13: #{net1_forward.1} parent=1 // pred_fallthru
      _
    // Predicated region
    $region14: #{net1_forward.1} parent=1 // pred_check
      _
    $region15: #{net1_forward.1} parent=1 // pred_check_branch
      %32 = sbr.rel (0) target = $region17
    $region16: #{net1_forward.1} parent=1 // pred_region
      %s34 = ssub.s32 8192, 8192
      %35 = vsyncadd [#allocation6], %s34
      %s36 = sshll.u32 [#allocation5], 4
      %s37 = int_to_ptr.vmem [resolvable:$true] %s36
      %42 = dma.hbm_to_vmem [thread:$0]  %s3, 8192, %s37, [#allocation6], 256, 256, 16
    $region17: #{net1_forward.1} parent=1 // pred_fallthru
      _
    // Predicated region
    $region18: #{net1_forward.1} parent=1 // pred_check
      _
    $region19: #{net1_forward.1} parent=1 // pred_check_branch
      %44 = sbr.rel (0) target = $region21
    $region20: #{net1_forward.1} parent=1 // pred_region
      _
    $region21: #{net1_forward.1} parent=1 // pred_fallthru
      _
    // Predicated region
    $region22: #{net1_forward.1} parent=1 // pred_check
      _
    $region23: #{net1_forward.1} parent=1 // pred_check_branch
      %46 = sbr.rel (0) target = $region25
    $region24: #{net1_forward.1} parent=1 // pred_region
      %s48 = ssub.s32 4096, 4096
      %49 = vsyncadd [#allocation6], %s48
      %s50 = sshll.u32 [#allocation7], 4
      %s51 = int_to_ptr.vmem [resolvable:$true] %s50
      %56 = dma.hbm_to_vmem [thread:$0]  %s5, 4096, %s51, [#allocation6], 128, 128, 8
    $region25: #{net1_forward.1} parent=1 // pred_fallthru
      _
    // Predicated region
    $region26: #{net1_forward.1} parent=1 // pred_check
      _
    $region27: #{net1_forward.1} parent=1 // pred_check_branch
      %58 = sbr.rel (0) target = $region29
    $region28: #{net1_forward.1} parent=1 // pred_region
      _
    $region29: #{net1_forward.1} parent=1 // pred_fallthru
      _
    // Predicated region
    $region30: #{net1_forward.1} parent=1 // pred_check
      _
    $region31: #{net1_forward.1} parent=1 // pred_check_branch
      %60 = sbr.rel (0) target = $region33
    $region32: #{net1_forward.1} parent=1 // pred_region
      %61 = dma.done [#allocation3], 8192
    $region33: #{net1_forward.1} parent=1 // pred_fallthru
      _
    // Predicated region
    $region34: #{net1_forward.1} parent=1 // pred_check
      _
    $region35: #{net1_forward.1} parent=1 // pred_check_branch
      %63 = sbr.rel (0) target = $region37
    $region36: #{net1_forward.1} parent=1 // pred_region
      %64 = dma.done [#allocation6], 8192
    $region37: #{net1_forward.1} parent=1 // pred_fallthru
      _
    // Predicated region
    $region38: #{net1_forward.1} parent=1 // pred_check
      _
    $region39: #{net1_forward.1} parent=1 // pred_check_branch
      %66 = sbr.rel (0) target = $region41
    $region40: #{net1_forward.1} parent=1 // pred_region
      %67 = dma.done [#allocation6], 4096
    $region41: #{net1_forward.1} parent=1 // pred_fallthru
      _
    %v68 = vld [vmem:[%s0] sm:$0xff]
    %v69 = vld [vmem:[%s0 + $0x8] sm:$0xff]
    %v70 = vld [vmem:[#allocation2] sm:$0xff]
    %v71 = vld [vmem:[#allocation2 + $0x8] sm:$0xff]
    %v72 = vld [vmem:[#allocation2 + $0x10] sm:$0xff]
    %v73 = vld [vmem:[#allocation2 + $0x18] sm:$0xff]
    %v74 = vld [vmem:[#allocation2 + $0x20] sm:$0xff]
    %v75 = vld [vmem:[#allocation2 + $0x28] sm:$0xff]
    %v76 = vld [vmem:[#allocation2 + $0x30] sm:$0xff]
    %v77 = vld [vmem:[#allocation2 + $0x38] sm:$0xff]
    %v78 = vld [vmem:[#allocation2 + $0x40] sm:$0xff]
    %v79 = vld [vmem:[#allocation2 + $0x48] sm:$0xff]
    %v80 = vld [vmem:[#allocation2 + $0x50] sm:$0xff]
    %v81 = vld [vmem:[#allocation2 + $0x58] sm:$0xff]
    %v82 = vld [vmem:[#allocation2 + $0x60] sm:$0xff]
    %v83 = vld [vmem:[#allocation2 + $0x68] sm:$0xff]
    %v84 = vld [vmem:[#allocation2 + $0x70] sm:$0xff]
    %v85 = vld [vmem:[#allocation2 + $0x78] sm:$0xff]
    %v86 = vld [vmem:[#allocation2 + $0x80] sm:$0xff]
    %v87 = vld [vmem:[#allocation2 + $0x88] sm:$0xff]
    %v88 = vld [vmem:[#allocation2 + $0x90] sm:$0xff]
    %v89 = vld [vmem:[#allocation2 + $0x98] sm:$0xff]
    %v90 = vld [vmem:[#allocation2 + $0xa0] sm:$0xff]
    %v91 = vld [vmem:[#allocation2 + $0xa8] sm:$0xff]
    %v92 = vld [vmem:[#allocation2 + $0xb0] sm:$0xff]
    %v93 = vld [vmem:[#allocation2 + $0xb8] sm:$0xff]
    %v94 = vld [vmem:[#allocation2 + $0xc0] sm:$0xff]
    %v95 = vld [vmem:[#allocation2 + $0xc8] sm:$0xff]
    %v96 = vld [vmem:[#allocation2 + $0xd0] sm:$0xff]
    %v97 = vld [vmem:[#allocation2 + $0xd8] sm:$0xff]
    %v98 = vld [vmem:[#allocation2 + $0xe0] sm:$0xff]
    %v99 = vld [vmem:[#allocation2 + $0xe8] sm:$0xff]
    %v100 = vld [vmem:[#allocation2 + $0xf0] sm:$0xff]
    %v101 = vld [vmem:[#allocation2 + $0xf8] sm:$0xff]
    %v102 = vld [vmem:[#allocation2 + $0x100] sm:$0xff]
    %v103 = vld [vmem:[#allocation2 + $0x108] sm:$0xff]
    %v104 = vld [vmem:[#allocation2 + $0x110] sm:$0xff]
    %v105 = vld [vmem:[#allocation2 + $0x118] sm:$0xff]
    %v106 = vld [vmem:[#allocation2 + $0x120] sm:$0xff]
    %v107 = vld [vmem:[#allocation2 + $0x128] sm:$0xff]
    %v108 = vld [vmem:[#allocation2 + $0x130] sm:$0xff]
    %v109 = vld [vmem:[#allocation2 + $0x138] sm:$0xff]
    %v110 = vld [vmem:[#allocation2 + $0x140] sm:$0xff]
    %v111 = vld [vmem:[#allocation2 + $0x148] sm:$0xff]
    %v112 = vld [vmem:[#allocation2 + $0x150] sm:$0xff]
    %v113 = vld [vmem:[#allocation2 + $0x158] sm:$0xff]
    %v114 = vld [vmem:[#allocation2 + $0x160] sm:$0xff]
    %v115 = vld [vmem:[#allocation2 + $0x168] sm:$0xff]
    %v116 = vld [vmem:[#allocation2 + $0x170] sm:$0xff]
    %v117 = vld [vmem:[#allocation2 + $0x178] sm:$0xff]
    %v118 = vld [vmem:[#allocation2 + $0x180] sm:$0xff]
    %v119 = vld [vmem:[#allocation2 + $0x188] sm:$0xff]
    %v120 = vld [vmem:[#allocation2 + $0x190] sm:$0xff]
    %v121 = vld [vmem:[#allocation2 + $0x198] sm:$0xff]
    %v122 = vld [vmem:[#allocation2 + $0x1a0] sm:$0xff]
    %v123 = vld [vmem:[#allocation2 + $0x1a8] sm:$0xff]
    %v124 = vld [vmem:[#allocation2 + $0x1b0] sm:$0xff]
    %v125 = vld [vmem:[#allocation2 + $0x1b8] sm:$0xff]
    %v126 = vld [vmem:[#allocation2 + $0x1c0] sm:$0xff]
    %v127 = vld [vmem:[#allocation2 + $0x1c8] sm:$0xff]
    %v128 = vld [vmem:[#allocation2 + $0x1d0] sm:$0xff]
    %v129 = vld [vmem:[#allocation2 + $0x1d8] sm:$0xff]
    %v130 = vld [vmem:[#allocation2 + $0x1e0] sm:$0xff]
    %v131 = vld [vmem:[#allocation2 + $0x1e8] sm:$0xff]
    %v132 = vld [vmem:[#allocation2 + $0x1f0] sm:$0xff]
    %v133 = vld [vmem:[#allocation2 + $0x1f8] sm:$0xff]
    %v134 = vld [vmem:[%s2] sm:$0x3]
    %v136 = vlaneseq
    %v137 = vshrl.u32 %v136, 7
    %v138 = vsub.s32 0, %v137
    %v139 = vrot.slane %v134, %v138
    %v140 = vlaneseq
    %v141 = vshrl.u32 %v140, 7
    %v142 = vsub.s32 1, %v141
    %v143 = vrot.slane %v134, %v142
    %146 = vmatprep.subr.mxu0 %v71
    %147 = vmatpush1.msra.mxu0 %v70
    %148 = vmatprep.subr.mxu0 %v73
    %149 = vmatpush1.msra.mxu0 %v72
    %150 = vmatprep.subr.mxu0 %v75
    %151 = vmatpush1.msra.mxu0 %v74
    %152 = vmatprep.subr.mxu0 %v77
    %153 = vmatpush1.msra.mxu0 %v76
    %154 = vmatprep.subr.mxu0 %v79
    %155 = vmatpush1.msra.mxu0 %v78
    %156 = vmatprep.subr.mxu0 %v81
    %157 = vmatpush1.msra.mxu0 %v80
    %158 = vmatprep.subr.mxu0 %v83
    %159 = vmatpush1.msra.mxu0 %v82
    %160 = vmatprep.subr.mxu0 %v85
    %161 = vmatpush1.msra.mxu0 %v84
    %162 = vmatprep.subr.mxu0 %v87
    %163 = vmatpush1.msra.mxu0 %v86
    %164 = vmatprep.subr.mxu0 %v89
    %165 = vmatpush1.msra.mxu0 %v88
    %166 = vmatprep.subr.mxu0 %v91
    %167 = vmatpush1.msra.mxu0 %v90
    %168 = vmatprep.subr.mxu0 %v93
    %169 = vmatpush1.msra.mxu0 %v92
    %170 = vmatprep.subr.mxu0 %v95
    %171 = vmatpush1.msra.mxu0 %v94
    %172 = vmatprep.subr.mxu0 %v97
    %173 = vmatpush1.msra.mxu0 %v96
    %174 = vmatprep.subr.mxu0 %v99
    %175 = vmatpush1.msra.mxu0 %v98
    %176 = vmatprep.subr.mxu0 %v101
    %177 = vmatpush1.msra.mxu0 %v100
    %178 = vmatprep.subr.mxu0 %v103
    %179 = vmatpush1.msra.mxu0 %v102
    %180 = vmatprep.subr.mxu0 %v105
    %181 = vmatpush1.msra.mxu0 %v104
    %182 = vmatprep.subr.mxu0 %v107
    %183 = vmatpush1.msra.mxu0 %v106
    %184 = vmatprep.subr.mxu0 %v109
    %185 = vmatpush1.msra.mxu0 %v108
    %186 = vmatprep.subr.mxu0 %v111
    %187 = vmatpush1.msra.mxu0 %v110
    %188 = vmatprep.subr.mxu0 %v113
    %189 = vmatpush1.msra.mxu0 %v112
    %190 = vmatprep.subr.mxu0 %v115
    %191 = vmatpush1.msra.mxu0 %v114
    %192 = vmatprep.subr.mxu0 %v117
    %193 = vmatpush1.msra.mxu0 %v116
    %194 = vmatprep.subr.mxu0 %v119
    %195 = vmatpush1.msra.mxu0 %v118
    %196 = vmatprep.subr.mxu0 %v121
    %197 = vmatpush1.msra.mxu0 %v120
    %198 = vmatprep.subr.mxu0 %v123
    %199 = vmatpush1.msra.mxu0 %v122
    %200 = vmatprep.subr.mxu0 %v125
    %201 = vmatpush1.msra.mxu0 %v124
    %202 = vmatprep.subr.mxu0 %v127
    %203 = vmatpush1.msra.mxu0 %v126
    %204 = vmatprep.subr.mxu0 %v129
    %205 = vmatpush1.msra.mxu0 %v128
    %206 = vmatprep.subr.mxu0 %v131
    %207 = vmatpush1.msra.mxu0 %v130
    %208 = vmatprep.subr.mxu0 %v133
    %209 = vmatpush1.msra.mxu0 %v132
    %210 = vmatprep.mubr.f32.mxu0 %v69
    %211 = vmatmul.mubr.f32.gmra.mrb[0].mxu0 %v68
    %v212 = vpop.f32.mrb[0].mxu0
    %v213 = vadd.f32 %v139, %v212
    %v214 = vpop.f32.mrb[0].mxu0
    %v215 = vadd.f32 %v143, %v214
    %216 = vdwg.mxu0
    %v217 = vmul.f32 %v213, 0.01
    %v218 = vmul.f32 %v215, 0.01
    %v219 = vmax.f32 %v213, %v217
    %v220 = vmax.f32 %v215, %v218
    %v221 = vld [vmem:[#allocation5] sm:$0xff]
    %v222 = vld [vmem:[#allocation5 + $0x8] sm:$0xff]
    %v223 = vld [vmem:[#allocation5 + $0x10] sm:$0xff]
    %v224 = vld [vmem:[#allocation5 + $0x18] sm:$0xff]
    %v225 = vld [vmem:[#allocation5 + $0x20] sm:$0xff]
    %v226 = vld [vmem:[#allocation5 + $0x28] sm:$0xff]
    %v227 = vld [vmem:[#allocation5 + $0x30] sm:$0xff]
    %v228 = vld [vmem:[#allocation5 + $0x38] sm:$0xff]
    %v229 = vld [vmem:[#allocation5 + $0x40] sm:$0xff]
    %v230 = vld [vmem:[#allocation5 + $0x48] sm:$0xff]
    %v231 = vld [vmem:[#allocation5 + $0x50] sm:$0xff]
    %v232 = vld [vmem:[#allocation5 + $0x58] sm:$0xff]
    %v233 = vld [vmem:[#allocation5 + $0x60] sm:$0xff]
    %v234 = vld [vmem:[#allocation5 + $0x68] sm:$0xff]
    %v235 = vld [vmem:[#allocation5 + $0x70] sm:$0xff]
    %v236 = vld [vmem:[#allocation5 + $0x78] sm:$0xff]
    %v237 = vld [vmem:[#allocation5 + $0x80] sm:$0xff]
    %v238 = vld [vmem:[#allocation5 + $0x88] sm:$0xff]
    %v239 = vld [vmem:[#allocation5 + $0x90] sm:$0xff]
    %v240 = vld [vmem:[#allocation5 + $0x98] sm:$0xff]
    %v241 = vld [vmem:[#allocation5 + $0xa0] sm:$0xff]
    %v242 = vld [vmem:[#allocation5 + $0xa8] sm:$0xff]
    %v243 = vld [vmem:[#allocation5 + $0xb0] sm:$0xff]
    %v244 = vld [vmem:[#allocation5 + $0xb8] sm:$0xff]
    %v245 = vld [vmem:[#allocation5 + $0xc0] sm:$0xff]
    %v246 = vld [vmem:[#allocation5 + $0xc8] sm:$0xff]
    %v247 = vld [vmem:[#allocation5 + $0xd0] sm:$0xff]
    %v248 = vld [vmem:[#allocation5 + $0xd8] sm:$0xff]
    %v249 = vld [vmem:[#allocation5 + $0xe0] sm:$0xff]
    %v250 = vld [vmem:[#allocation5 + $0xe8] sm:$0xff]
    %v251 = vld [vmem:[#allocation5 + $0xf0] sm:$0xff]
    %v252 = vld [vmem:[#allocation5 + $0xf8] sm:$0xff]
    %v253 = vld [vmem:[#allocation5 + $0x100] sm:$0xff]
    %v254 = vld [vmem:[#allocation5 + $0x108] sm:$0xff]
    %v255 = vld [vmem:[#allocation5 + $0x110] sm:$0xff]
    %v256 = vld [vmem:[#allocation5 + $0x118] sm:$0xff]
    %v257 = vld [vmem:[#allocation5 + $0x120] sm:$0xff]
    %v258 = vld [vmem:[#allocation5 + $0x128] sm:$0xff]
    %v259 = vld [vmem:[#allocation5 + $0x130] sm:$0xff]
    %v260 = vld [vmem:[#allocation5 + $0x138] sm:$0xff]
    %v261 = vld [vmem:[#allocation5 + $0x140] sm:$0xff]
    %v262 = vld [vmem:[#allocation5 + $0x148] sm:$0xff]
    %v263 = vld [vmem:[#allocation5 + $0x150] sm:$0xff]
    %v264 = vld [vmem:[#allocation5 + $0x158] sm:$0xff]
    %v265 = vld [vmem:[#allocation5 + $0x160] sm:$0xff]
    %v266 = vld [vmem:[#allocation5 + $0x168] sm:$0xff]
    %v267 = vld [vmem:[#allocation5 + $0x170] sm:$0xff]
    %v268 = vld [vmem:[#allocation5 + $0x178] sm:$0xff]
    %v269 = vld [vmem:[#allocation5 + $0x180] sm:$0xff]
    %v270 = vld [vmem:[#allocation5 + $0x188] sm:$0xff]
    %v271 = vld [vmem:[#allocation5 + $0x190] sm:$0xff]
    %v272 = vld [vmem:[#allocation5 + $0x198] sm:$0xff]
    %v273 = vld [vmem:[#allocation5 + $0x1a0] sm:$0xff]
    %v274 = vld [vmem:[#allocation5 + $0x1a8] sm:$0xff]
    %v275 = vld [vmem:[#allocation5 + $0x1b0] sm:$0xff]
    %v276 = vld [vmem:[#allocation5 + $0x1b8] sm:$0xff]
    %v277 = vld [vmem:[#allocation5 + $0x1c0] sm:$0xff]
    %v278 = vld [vmem:[#allocation5 + $0x1c8] sm:$0xff]
    %v279 = vld [vmem:[#allocation5 + $0x1d0] sm:$0xff]
    %v280 = vld [vmem:[#allocation5 + $0x1d8] sm:$0xff]
    %v281 = vld [vmem:[#allocation5 + $0x1e0] sm:$0xff]
    %v282 = vld [vmem:[#allocation5 + $0x1e8] sm:$0xff]
    %v283 = vld [vmem:[#allocation5 + $0x1f0] sm:$0xff]
    %v284 = vld [vmem:[#allocation5 + $0x1f8] sm:$0xff]
    %v285 = vld [vmem:[%s4] sm:$0x3]
    %v287 = vlaneseq
    %v288 = vshrl.u32 %v287, 7
    %v289 = vsub.s32 0, %v288
    %v290 = vrot.slane %v285, %v289
    %v291 = vlaneseq
    %v292 = vshrl.u32 %v291, 7
    %v293 = vsub.s32 1, %v292
    %v294 = vrot.slane %v285, %v293
    %297 = vmatprep.subr.mxu0 %v222
    %298 = vmatpush1.msra.mxu0 %v221
    %299 = vmatprep.subr.mxu0 %v224
    %300 = vmatpush1.msra.mxu0 %v223
    %301 = vmatprep.subr.mxu0 %v226
    %302 = vmatpush1.msra.mxu0 %v225
    %303 = vmatprep.subr.mxu0 %v228
    %304 = vmatpush1.msra.mxu0 %v227
    %305 = vmatprep.subr.mxu0 %v230
    %306 = vmatpush1.msra.mxu0 %v229
    %307 = vmatprep.subr.mxu0 %v232
    %308 = vmatpush1.msra.mxu0 %v231
    %309 = vmatprep.subr.mxu0 %v234
    %310 = vmatpush1.msra.mxu0 %v233
    %311 = vmatprep.subr.mxu0 %v236
    %312 = vmatpush1.msra.mxu0 %v235
    %313 = vmatprep.subr.mxu0 %v238
    %314 = vmatpush1.msra.mxu0 %v237
    %315 = vmatprep.subr.mxu0 %v240
    %316 = vmatpush1.msra.mxu0 %v239
    %317 = vmatprep.subr.mxu0 %v242
    %318 = vmatpush1.msra.mxu0 %v241
    %319 = vmatprep.subr.mxu0 %v244
    %320 = vmatpush1.msra.mxu0 %v243
    %321 = vmatprep.subr.mxu0 %v246
    %322 = vmatpush1.msra.mxu0 %v245
    %323 = vmatprep.subr.mxu0 %v248
    %324 = vmatpush1.msra.mxu0 %v247
    %325 = vmatprep.subr.mxu0 %v250
    %326 = vmatpush1.msra.mxu0 %v249
    %327 = vmatprep.subr.mxu0 %v252
    %328 = vmatpush1.msra.mxu0 %v251
    %329 = vmatprep.subr.mxu0 %v254
    %330 = vmatpush1.msra.mxu0 %v253
    %331 = vmatprep.subr.mxu0 %v256
    %332 = vmatpush1.msra.mxu0 %v255
    %333 = vmatprep.subr.mxu0 %v258
    %334 = vmatpush1.msra.mxu0 %v257
    %335 = vmatprep.subr.mxu0 %v260
    %336 = vmatpush1.msra.mxu0 %v259
    %337 = vmatprep.subr.mxu0 %v262
    %338 = vmatpush1.msra.mxu0 %v261
    %339 = vmatprep.subr.mxu0 %v264
    %340 = vmatpush1.msra.mxu0 %v263
    %341 = vmatprep.subr.mxu0 %v266
    %342 = vmatpush1.msra.mxu0 %v265
    %343 = vmatprep.subr.mxu0 %v268
    %344 = vmatpush1.msra.mxu0 %v267
    %345 = vmatprep.subr.mxu0 %v270
    %346 = vmatpush1.msra.mxu0 %v269
    %347 = vmatprep.subr.mxu0 %v272
    %348 = vmatpush1.msra.mxu0 %v271
    %349 = vmatprep.subr.mxu0 %v274
    %350 = vmatpush1.msra.mxu0 %v273
    %351 = vmatprep.subr.mxu0 %v276
    %352 = vmatpush1.msra.mxu0 %v275
    %353 = vmatprep.subr.mxu0 %v278
    %354 = vmatpush1.msra.mxu0 %v277
    %355 = vmatprep.subr.mxu0 %v280
    %356 = vmatpush1.msra.mxu0 %v279
    %357 = vmatprep.subr.mxu0 %v282
    %358 = vmatpush1.msra.mxu0 %v281
    %359 = vmatprep.subr.mxu0 %v284
    %360 = vmatpush1.msra.mxu0 %v283
    %361 = vmatprep.mubr.f32.mxu0 %v220
    %362 = vmatmul.mubr.f32.gmra.mrb[0].mxu0 %v219
    %v363 = vpop.f32.mrb[0].mxu0
    %v364 = vadd.f32 %v290, %v363
    %v365 = vpop.f32.mrb[0].mxu0
    %v366 = vadd.f32 %v294, %v365
    %367 = vdwg.mxu0
    %v368 = vmul.f32 %v364, 0.01
    %v369 = vmul.f32 %v366, 0.01
    %v370 = vmax.f32 %v364, %v368
    %v371 = vmax.f32 %v366, %v369
    %v372 = vld [vmem:[#allocation7] sm:$0xff]
    %v373 = vld [vmem:[#allocation7 + $0x8] sm:$0xff]
    %v374 = vld [vmem:[#allocation7 + $0x10] sm:$0xff]
    %v375 = vld [vmem:[#allocation7 + $0x18] sm:$0xff]
    %v376 = vld [vmem:[#allocation7 + $0x20] sm:$0xff]
    %v377 = vld [vmem:[#allocation7 + $0x28] sm:$0xff]
    %v378 = vld [vmem:[#allocation7 + $0x30] sm:$0xff]
    %v379 = vld [vmem:[#allocation7 + $0x38] sm:$0xff]
    %v380 = vld [vmem:[#allocation7 + $0x40] sm:$0xff]
    %v381 = vld [vmem:[#allocation7 + $0x48] sm:$0xff]
    %v382 = vld [vmem:[#allocation7 + $0x50] sm:$0xff]
    %v383 = vld [vmem:[#allocation7 + $0x58] sm:$0xff]
    %v384 = vld [vmem:[#allocation7 + $0x60] sm:$0xff]
    %v385 = vld [vmem:[#allocation7 + $0x68] sm:$0xff]
    %v386 = vld [vmem:[#allocation7 + $0x70] sm:$0xff]
    %v387 = vld [vmem:[#allocation7 + $0x78] sm:$0xff]
    %v388 = vld [vmem:[#allocation7 + $0x80] sm:$0xff]
    %v389 = vld [vmem:[#allocation7 + $0x88] sm:$0xff]
    %v390 = vld [vmem:[#allocation7 + $0x90] sm:$0xff]
    %v391 = vld [vmem:[#allocation7 + $0x98] sm:$0xff]
    %v392 = vld [vmem:[#allocation7 + $0xa0] sm:$0xff]
    %v393 = vld [vmem:[#allocation7 + $0xa8] sm:$0xff]
    %v394 = vld [vmem:[#allocation7 + $0xb0] sm:$0xff]
    %v395 = vld [vmem:[#allocation7 + $0xb8] sm:$0xff]
    %v396 = vld [vmem:[#allocation7 + $0xc0] sm:$0xff]
    %v397 = vld [vmem:[#allocation7 + $0xc8] sm:$0xff]
    %v398 = vld [vmem:[#allocation7 + $0xd0] sm:$0xff]
    %v399 = vld [vmem:[#allocation7 + $0xd8] sm:$0xff]
    %v400 = vld [vmem:[#allocation7 + $0xe0] sm:$0xff]
    %v401 = vld [vmem:[#allocation7 + $0xe8] sm:$0xff]
    %v402 = vld [vmem:[#allocation7 + $0xf0] sm:$0xff]
    %v403 = vld [vmem:[#allocation7 + $0xf8] sm:$0xff]
    %v404 = vld [vmem:[%s6] sm:$0x1]
    %v406 = vlaneseq
    %v407 = vshrl.u32 %v406, 7
    %v408 = vsub.s32 0, %v407
    %v409 = vrot.slane %v404, %v408
    %411 = vmatprep.subr.mxu0 0.0
    %412 = vmatpush1.msra.mxu0 %v372
    %413 = vmatprep.subr.mxu0 0.0
    %414 = vmatpush1.msra.mxu0 %v373
    %415 = vmatprep.subr.mxu0 0.0
    %416 = vmatpush1.msra.mxu0 %v374
    %417 = vmatprep.subr.mxu0 0.0
    %418 = vmatpush1.msra.mxu0 %v375
    %419 = vmatprep.subr.mxu0 0.0
    %420 = vmatpush1.msra.mxu0 %v376
    %421 = vmatprep.subr.mxu0 0.0
    %422 = vmatpush1.msra.mxu0 %v377
    %423 = vmatprep.subr.mxu0 0.0
    %424 = vmatpush1.msra.mxu0 %v378
    %425 = vmatprep.subr.mxu0 0.0
    %426 = vmatpush1.msra.mxu0 %v379
    %427 = vmatprep.subr.mxu0 0.0
    %428 = vmatpush1.msra.mxu0 %v380
    %429 = vmatprep.subr.mxu0 0.0
    %430 = vmatpush1.msra.mxu0 %v381
    %431 = vmatprep.subr.mxu0 0.0
    %432 = vmatpush1.msra.mxu0 %v382
    %433 = vmatprep.subr.mxu0 0.0
    %434 = vmatpush1.msra.mxu0 %v383
    %435 = vmatprep.subr.mxu0 0.0
    %436 = vmatpush1.msra.mxu0 %v384
    %437 = vmatprep.subr.mxu0 0.0
    %438 = vmatpush1.msra.mxu0 %v385
    %439 = vmatprep.subr.mxu0 0.0
    %440 = vmatpush1.msra.mxu0 %v386
    %441 = vmatprep.subr.mxu0 0.0
    %442 = vmatpush1.msra.mxu0 %v387
    %443 = vmatprep.subr.mxu0 0.0
    %444 = vmatpush1.msra.mxu0 %v388
    %445 = vmatprep.subr.mxu0 0.0
    %446 = vmatpush1.msra.mxu0 %v389
    %447 = vmatprep.subr.mxu0 0.0
    %448 = vmatpush1.msra.mxu0 %v390
    %449 = vmatprep.subr.mxu0 0.0
    %450 = vmatpush1.msra.mxu0 %v391
    %451 = vmatprep.subr.mxu0 0.0
    %452 = vmatpush1.msra.mxu0 %v392
    %453 = vmatprep.subr.mxu0 0.0
    %454 = vmatpush1.msra.mxu0 %v393
    %455 = vmatprep.subr.mxu0 0.0
    %456 = vmatpush1.msra.mxu0 %v394
    %457 = vmatprep.subr.mxu0 0.0
    %458 = vmatpush1.msra.mxu0 %v395
    %459 = vmatprep.subr.mxu0 0.0
    %460 = vmatpush1.msra.mxu0 %v396
    %461 = vmatprep.subr.mxu0 0.0
    %462 = vmatpush1.msra.mxu0 %v397
    %463 = vmatprep.subr.mxu0 0.0
    %464 = vmatpush1.msra.mxu0 %v398
    %465 = vmatprep.subr.mxu0 0.0
    %466 = vmatpush1.msra.mxu0 %v399
    %467 = vmatprep.subr.mxu0 0.0
    %468 = vmatpush1.msra.mxu0 %v400
    %469 = vmatprep.subr.mxu0 0.0
    %470 = vmatpush1.msra.mxu0 %v401
    %471 = vmatprep.subr.mxu0 0.0
    %472 = vmatpush1.msra.mxu0 %v402
    %473 = vmatprep.subr.mxu0 0.0
    %474 = vmatpush1.msra.mxu0 %v403
    %475 = vmatprep.mubr.f32.mxu0 %v371
    %476 = vmatmul.mubr.f32.gmra.mrb[0].mxu0 %v370
    %v477 = vpop.f32.mrb[0].mxu0
    %v478 = vadd.f32 %v409, %v477
    %v479 = vpop.f32.mrb[0].mxu0
    %480 = vdwg.mxu0
    %481 = vst [vmem:[#allocation8] sm:$0xff] %v478
    // Predicated region
    $region42: #{net1_forward.1} parent=1 // pred_check
      _
    $region43: #{net1_forward.1} parent=1 // pred_check_branch
      %483 = sbr.rel (0) target = $region45
    $region44: #{net1_forward.1} parent=1 // pred_region
      %s485 = ssub.s32 128, 128
      %486 = vsyncadd [#allocation4], %s485
      %s488 = sshll.u32 [#allocation8], 4
      %s489 = int_to_ptr.vmem [resolvable:$true] %s488
      %491 = dma.vmem_to_hbm [thread:$0]  %s489, 128, %s7, [#allocation4]
    $region45: #{net1_forward.1} parent=1 // pred_fallthru
      _
    // Predicated region
    $region46: #{net1_forward.1} parent=1 // pred_check
      _
    $region47: #{net1_forward.1} parent=1 // pred_check_branch
      %493 = sbr.rel (0) target = $region49
    $region48: #{net1_forward.1} parent=1 // pred_region
      %494 = dma.done [#allocation4], 128
    $region49: #{net1_forward.1} parent=1 // pred_fallthru
      _
    %495 = vsyncpa [#allocation3], 1
    %496 = vsyncpa [#allocation6], 1
    %497 = vsyncpa [#allocation4], 1

</llo_original>
